<compile_context>
chip_gen: v6e
topology: v6e:2x2x1
jax: 0.10.0
libtpu: 0.0.40
codegen_flags: <defaults>
</compile_context>

<pallas_src>
import jax
import jax.numpy as jnp
from jax.experimental import pallas as pl
from jax.experimental.pallas import tpu as pltpu

LANES = 128
# Live-VMEM budget for double-buffered input blocks + the f32 accumulator.
LIVE_VMEM_BUDGET = 20 * 1024 * 1024
# Explicit scoped-VMEM limit: equals the v6e/v7x default, raises v5e's 16 MiB.
VMEM_LIMIT_BYTES = 32 * 1024 * 1024


def _num_tensorcores() -> int:
    """Best-effort TensorCores-per-chip: 2 on v7x-class parts, else 1."""
    try:
        kind = jax.devices()[0].device_kind.lower()
    except Exception:
        return 1
    return 2 if "7" in kind else 1


def _sublane_align(dtype) -> int:
    # f32 -> 8, bf16/f16 -> 16, int8/fp8/bool -> 32 (packed-sublane multiple).
    return max(8, 32 // jnp.dtype(dtype).itemsize)


def _make_mae_kernel(tm, bpc, valid_rows):
    def kernel(yh_ref, yt_ref, out_ref, acc_ref):
        c = pl.program_id(0)          # core-chunk axis
        i = pl.program_id(1)          # reduction axis ("arbitrary")

        @pl.when(i == 0)
        def _():
            acc_ref[...] = jnp.zeros_like(acc_ref)

        # |y_hat - y_true| in f32; cast happens after the DMA so narrow input
        # dtypes travel packed over HBM.
        absdiff = jnp.abs(yh_ref[...].astype(jnp.float32)
                          - yt_ref[...].astype(jnp.float32))

        logical_block = c * bpc + i
        fully_valid = (logical_block + 1) * tm <= valid_rows

        # Hot path: pure VPU accumulate, no masking.
        @pl.when(fully_valid)
        def _():
            acc_ref[...] += absdiff

        # Cold path (last partial block / clamped overshoot blocks only):
        # mask rows past the end of the real data.
        @pl.when(jnp.logical_not(fully_valid))
        def _():
            row = logical_block * tm + jax.lax.broadcasted_iota(
                jnp.int32, (tm, LANES), 0)
            acc_ref[...] += jnp.where(row < valid_rows, absdiff, 0.0)

        # Finalize in-kernel: collapse the (tm, 128) accumulator into one
        # (8, 128) output block per core chunk (row 0 holds the lane sums).
        @pl.when(i == bpc - 1)
        def _():
            lane_sum = jnp.sum(acc_ref[...], axis=0, keepdims=True)   # (1, 128)
            out_ref[...] = jnp.where(
                jax.lax.broadcasted_iota(jnp.int32, (8, LANES), 0) == 0,
                lane_sum, 0.0)

    return kernel


def mae_loss(y_hat, y_true):
    assert y_hat.shape == y_true.shape, "L1Loss requires matching shapes"
    n_elem = y_hat.size

    yh = jnp.ravel(y_hat)   # free reshape: no dtype cast, no pad copy
    yt = jnp.ravel(y_true)

    tail = n_elem % LANES
    head = n_elem - tail

    # <128-element lane-ragged tail handled with plain JAX (no full-array pad).
    # TODO(synk): a fully copy-free ragged path would need a 1-D ANY-space
    # kernel with element masking; the common multiple-of-128 case is copy-free.
    if tail:
        tail_sum = jnp.sum(jnp.abs(yh[head:].astype(jnp.float32)
                                   - yt[head:].astype(jnp.float32)))
    else:
        tail_sum = jnp.float32(0.0)

    if head == 0:   # fewer than 128 elements: nothing for the kernel to do
        return (tail_sum / jnp.float32(n_elem)).astype(jnp.float32)

    rows = head // LANES
    if tail:
        yh2 = yh[:head].reshape(rows, LANES)
        yt2 = yt[:head].reshape(rows, LANES)
    else:
        yh2 = yh.reshape(rows, LANES)
        yt2 = yt.reshape(rows, LANES)

    # Dtype-aware row tile: 2x double-buffered input blocks + f32 accumulator
    # must fit LIVE_VMEM_BUDGET; align to the packed-dtype sublane multiple.
    it_h = jnp.dtype(y_hat.dtype).itemsize
    it_t = jnp.dtype(y_true.dtype).itemsize
    bytes_per_row = LANES * (2 * (it_h + it_t) + 4)
    tm_max = max(8, LIVE_VMEM_BUDGET // bytes_per_row)   # 8192 rows for f32
    align = max(_sublane_align(y_hat.dtype), _sublane_align(y_true.dtype))

    if rows <= tm_max:
        tm = rows                                  # full dim: always legal
    else:
        tm = max(align, (tm_max // align) * align)

    total_blocks = pl.cdiv(rows, tm)
    ncores = max(1, min(_num_tensorcores(), total_blocks))
    bpc = pl.cdiv(total_blocks, ncores)            # row-blocks per core chunk
    grid = (ncores, bpc)

    def in_map(c, i):
        # Clamp so the DMA window never leaves the array; overshoot blocks are
        # fully masked to zero inside the kernel.
        return (jnp.minimum(c * bpc + i, total_blocks - 1), 0)

    if ncores > 1:
        dim_sem = (getattr(pltpu, "CORE_PARALLEL", "parallel"), "arbitrary")
    else:
        dim_sem = ("arbitrary", "arbitrary")

    partials = pl.pallas_call(
        _make_mae_kernel(tm, bpc, rows),
        out_shape=jax.ShapeDtypeStruct((ncores * 8, LANES), jnp.float32),
        grid_spec=pltpu.PrefetchScalarGridSpec(
            num_scalar_prefetch=0,
            grid=grid,
            in_specs=[
                pl.BlockSpec((tm, LANES), in_map),
                pl.BlockSpec((tm, LANES), in_map),
            ],
            out_specs=pl.BlockSpec((8, LANES), lambda c, i: (c, 0)),
            scratch_shapes=[pltpu.VMEM((tm, LANES), jnp.float32)],
        ),
        compiler_params=pltpu.CompilerParams(
            dimension_semantics=dim_sem,
            vmem_limit_bytes=VMEM_LIMIT_BYTES),
    )(yh2, yt2)

    total = jnp.sum(partials) + tail_sum
    return (total / jnp.float32(n_elem)).astype(jnp.float32)


if __name__ == "__main__":
    mae = jax.jit(mae_loss)

    key = jax.random.PRNGKey(0)
    k1, k2, k3, k4 = jax.random.split(key, 4)

    # Small shapes consistent with a generic prediction/target pair.
    y_hat = jax.random.normal(k1, (2, 4, 16, 16), dtype=jnp.float32)
    y_true = jax.random.normal(k2, (2, 4, 16, 16), dtype=jnp.float32)
    loss = mae(y_hat, y_true)
    jax.block_until_ready(loss)
    ref = jnp.mean(jnp.abs(y_hat - y_true))
    assert jnp.allclose(loss, ref, rtol=1e-5, atol=1e-6), (loss, ref)

    # Lane-ragged shape exercises the plain-JAX tail path.
    a = jax.random.normal(k3, (3, 5, 11), dtype=jnp.float32)
    b = jax.random.normal(k4, (3, 5, 11), dtype=jnp.float32)
    loss2 = mae(a, b)
    jax.block_until_ready(loss2)
    ref2 = jnp.mean(jnp.abs(a - b))
    assert jnp.allclose(loss2, ref2, rtol=1e-5, atol=1e-6), (loss2, ref2)

    print("KERNEL_OK")
</pallas_src>

<mosaic_0001>
module attributes {stable_mosaic.version = 11 : i64} {
  func.func @kernel(%arg0: i32, %arg1: i32, %arg2: memref<16x128xf32, #tpu.memory_space<vmem>>, %arg3: memref<16x128xf32, #tpu.memory_space<vmem>>, %arg4: memref<8x128xf32, #tpu.memory_space<vmem>>, %arg5: memref<16x128xf32, #tpu.memory_space<vmem>>) attributes {dimension_semantics = [#tpu.dimension_semantics<arbitrary>, #tpu.dimension_semantics<arbitrary>], iteration_bounds = array<i64: 1, 1>, scalar_prefetch = 0 : i64, scratch_operands = 1 : i64, tpu.core_type = #tpu.core_type<tc>, window_params = [{transform_indices = @transform_0, window_bounds = array<i64: 16, 128>}, {transform_indices = @transform_1, window_bounds = array<i64: 16, 128>}, {transform_indices = @transform_2, window_bounds = array<i64: 8, 128>}]} {
    %c0_i32 = arith.constant 0 : i32
    %0 = arith.cmpi eq, %arg1, %c0_i32 : i32
    %1 = arith.extui %0 : i1 to i32
    %c0_i32_0 = arith.constant 0 : i32
    %2 = arith.cmpi ne, %1, %c0_i32_0 : i32
    scf.if %2 {
      %cst = arith.constant 0.000000e+00 : f32
      %20 = vector.broadcast %cst : f32 to vector<16x128xf32>
      %c0_10 = arith.constant 0 : index
      %c0_11 = arith.constant 0 : index
      %21 = vector.load %arg5[%c0_10, %c0_11] : memref<16x128xf32, #tpu.memory_space<vmem>>, vector<16x128xf32>
      tpu.vector_store %arg5[%c0_10, %c0_11], %20 {strides = array<i32>} : memref<16x128xf32, #tpu.memory_space<vmem>>, vector<16x128xf32>,
    } else {
    }
    %c0 = arith.constant 0 : index
    %c0_1 = arith.constant 0 : index
    %3 = vector.load %arg2[%c0, %c0_1] : memref<16x128xf32, #tpu.memory_space<vmem>>, vector<16x128xf32>
    %c0_2 = arith.constant 0 : index
    %c0_3 = arith.constant 0 : index
    %4 = vector.load %arg3[%c0_2, %c0_3] : memref<16x128xf32, #tpu.memory_space<vmem>>, vector<16x128xf32>
    %5 = arith.subf %3, %4 : vector<16x128xf32>
    %6 = math.absf %5 : vector<16x128xf32>
    %c1_i32 = arith.constant 1 : i32
    %7 = arith.muli %arg0, %c1_i32 : i32
    %8 = arith.addi %7, %arg1 : i32
    %c1_i32_4 = arith.constant 1 : i32
    %9 = arith.addi %8, %c1_i32_4 : i32
    %c16_i32 = arith.constant 16 : i32
    %10 = arith.muli %9, %c16_i32 : i32
    %c16_i32_5 = arith.constant 16 : i32
    %11 = arith.cmpi sle, %10, %c16_i32_5 : i32
    %12 = arith.extui %11 : i1 to i32
    %c0_i32_6 = arith.constant 0 : i32
    %13 = arith.cmpi ne, %12, %c0_i32_6 : i32
    scf.if %13 {
      %c0_10 = arith.constant 0 : index
      %c0_11 = arith.constant 0 : index
      %20 = vector.load %arg5[%c0_10, %c0_11] : memref<16x128xf32, #tpu.memory_space<vmem>>, vector<16x128xf32>
      %21 = arith.addf %20, %6 : vector<16x128xf32>
      %c0_12 = arith.constant 0 : index
      %c0_13 = arith.constant 0 : index
      %22 = vector.load %arg5[%c0_12, %c0_13] : memref<16x128xf32, #tpu.memory_space<vmem>>, vector<16x128xf32>
      tpu.vector_store %arg5[%c0_12, %c0_13], %21 {strides = array<i32>} : memref<16x128xf32, #tpu.memory_space<vmem>>, vector<16x128xf32>,
    } else {
    }
    %true = arith.constant true
    %14 = arith.xori %11, %true : i1
    %15 = arith.extui %14 : i1 to i32
    %c0_i32_7 = arith.constant 0 : i32
    %16 = arith.cmpi ne, %15, %c0_i32_7 : i32
    scf.if %16 {
      %c16_i32_10 = arith.constant 16 : i32
      %20 = arith.muli %8, %c16_i32_10 : i32
      %21 = tpu.iota {dimensions = array<i32: 0>} : vector<16x128xi32>
      %22 = vector.broadcast %20 : i32 to vector<16x128xi32>
      %23 = arith.addi %22, %21 : vector<16x128xi32>
      %c0_11 = arith.constant 0 : index
      %c0_12 = arith.constant 0 : index
      %24 = vector.load %arg5[%c0_11, %c0_12] : memref<16x128xf32, #tpu.memory_space<vmem>>, vector<16x128xf32>
      %c16_i32_13 = arith.constant 16 : i32
      %25 = vector.broadcast %c16_i32_13 : i32 to vector<16x128xi32>
      %26 = arith.cmpi slt, %23, %25 : vector<16x128xi32>
      %cst = arith.constant 0.000000e+00 : f32
      %27 = vector.broadcast %cst : f32 to vector<16x128xf32>
      %28 = arith.select %26, %6, %27 : vector<16x128xi1>, vector<16x128xf32>
      %29 = arith.addf %24, %28 : vector<16x128xf32>
      %c0_14 = arith.constant 0 : index
      %c0_15 = arith.constant 0 : index
      %30 = vector.load %arg5[%c0_14, %c0_15] : memref<16x128xf32, #tpu.memory_space<vmem>>, vector<16x128xf32>
      tpu.vector_store %arg5[%c0_14, %c0_15], %29 {strides = array<i32>} : memref<16x128xf32, #tpu.memory_space<vmem>>, vector<16x128xf32>,
    } else {
    }
    %c0_i32_8 = arith.constant 0 : i32
    %17 = arith.cmpi eq, %arg1, %c0_i32_8 : i32
    %18 = arith.extui %17 : i1 to i32
    %c0_i32_9 = arith.constant 0 : i32
    %19 = arith.cmpi ne, %18, %c0_i32_9 : i32
    scf.if %19 {
      %c0_10 = arith.constant 0 : index
      %c0_11 = arith.constant 0 : index
      %20 = vector.load %arg5[%c0_10, %c0_11] : memref<16x128xf32, #tpu.memory_space<vmem>>, vector<16x128xf32>
      %cst = arith.constant dense<0.000000e+00> : vector<128xf32>
      %21 = vector.multi_reduction <add>, %20, %cst [0] : vector<16x128xf32> to vector<128xf32>
      %22 = vector.shape_cast %21 : vector<128xf32> to vector<1x128xf32>
      %23 = tpu.iota {dimensions = array<i32: 0>} : vector<8x128xi32>
      %c0_i32_12 = arith.constant 0 : i32
      %24 = vector.broadcast %c0_i32_12 : i32 to vector<8x128xi32>
      %25 = arith.cmpi eq, %23, %24 : vector<8x128xi32>
      %cst_13 = arith.constant 0.000000e+00 : f32
      %26 = vector.shape_cast %22 : vector<1x128xf32> to vector<1x128xf32>
      %27 = vector.broadcast %26 : vector<1x128xf32> to vector<8x128xf32>
      %28 = vector.broadcast %cst_13 : f32 to vector<8x128xf32>
      %29 = arith.select %25, %27, %28 : vector<8x128xi1>, vector<8x128xf32>
      %c0_14 = arith.constant 0 : index
      %c0_15 = arith.constant 0 : index
      %30 = vector.load %arg4[%c0_14, %c0_15] : memref<8x128xf32, #tpu.memory_space<vmem>>, vector<8x128xf32>
      tpu.vector_store %arg4[%c0_14, %c0_15], %29 {strides = array<i32>} : memref<8x128xf32, #tpu.memory_space<vmem>>, vector<8x128xf32>,
    } else {
    }
    return
  }
  func.func @transform_0(%arg0: i32, %arg1: i32) -> (i32, i32) {
    %c1_i32 = arith.constant 1 : i32
    %0 = arith.muli %arg0, %c1_i32 : i32
    %1 = arith.addi %0, %arg1 : i32
    %c0_i32 = arith.constant 0 : i32
    %2 = arith.minsi %1, %c0_i32 : i32
    %c0_i32_0 = arith.constant 0 : i32
    %c0_i32_1 = arith.constant 0 : i32
    return %2, %c0_i32_0 : i32, i32
  }
  func.func @transform_1(%arg0: i32, %arg1: i32) -> (i32, i32) {
    %c1_i32 = arith.constant 1 : i32
    %0 = arith.muli %arg0, %c1_i32 : i32
    %1 = arith.addi %0, %arg1 : i32
    %c0_i32 = arith.constant 0 : i32
    %2 = arith.minsi %1, %c0_i32 : i32
    %c0_i32_0 = arith.constant 0 : i32
    %c0_i32_1 = arith.constant 0 : i32
    return %2, %c0_i32_0 : i32, i32
  }
  func.func @transform_2(%arg0: i32, %arg1: i32) -> (i32, i32) {
    %c0_i32 = arith.constant 0 : i32
    %c0_i32_0 = arith.constant 0 : i32
    return %arg0, %c0_i32 : i32, i32
  }
}

</mosaic_0001>

<llo_original>
// kernel: mae_loss.1
$region0: #{mae_loss.1}
  #allocation0 [shape = 'u32[]', space=smem, size = 0x4, offset = 0x4, fixed_abs, tag = 'smem constant byte address 0x4 - core index']
  #allocation1 [shape = 'u32[144,128]{1,0:T(1,128)}', space=vmem, size = 0x12000, scoped, tag = 'internal scratch']
  #allocation2 [shape = 'f32[16,128]{1,0:T(8,128)}', space=vmem, size = 0x2000, scoped, tag = 'scratch operand']
  %s0 = inlined_call_operand.vmem [shape: f32[16,128], index: 0, kind: input, shape index: {}]
  %s1 = inlined_call_operand.vmem [shape: f32[16,128], index: 1, kind: input, shape index: {}]
  %s2 = inlined_call_operand.vmem [shape: f32[8,128], index: 2, kind: output, shape index: {}]
  %s3 = sld [smem:[#allocation0]]
  $region34: #{mae_loss.1} parent=0
    _
  %s5 = ssub.s32 1, %s3
  %s6 = scalar_select 0, %s5, %s3
  // Predicated region
  $region2: #{mae_loss.1} parent=0 // pred_check
    _
  $region3: #{mae_loss.1} parent=0 // pred_check_branch
    %8 = sbr.rel (0) target = $region5
  $region4: #{mae_loss.1} parent=0 // pred_region
    %s9 = sadd.s32 0, 0
    %p10 = scmp.lt.s32.totalorder %s9, 0
    %s11 = scalar_select %p10, %s9, 0
    %s12 = smul.u32 2, %s11
    %p13 = scmp.lt.s32.totalorder %s12, 1
    %s14 = scalar_select %p13, %s12, 1
    %s15 = smul.addr %s14, 8
    %s16 = scalar_lea.vmem %s0, %s15
    %s17 = sadd.s32 0, 0
    %p18 = scmp.lt.s32.totalorder %s17, 0
    %s19 = scalar_select %p18, %s17, 0
    %s20 = smul.u32 2, %s19
  $region5: #{mae_loss.1} parent=0 // pred_fallthru
    _
  // Predicated region
  $region6: #{mae_loss.1} parent=0 // pred_check
    _
  $region7: #{mae_loss.1} parent=0 // pred_check_branch
    %22 = sbr.rel (0) target = $region9
  $region8: #{mae_loss.1} parent=0 // pred_region
    %s23 = sadd.s32 0, 0
    %p24 = scmp.lt.s32.totalorder %s23, 0
    %s25 = scalar_select %p24, %s23, 0
    %s26 = smul.u32 2, %s25
    %p27 = scmp.lt.s32.totalorder %s26, 1
    %s28 = scalar_select %p27, %s26, 1
    %s29 = smul.addr %s28, 8
    %s30 = scalar_lea.vmem %s1, %s29
    %s31 = sadd.s32 0, 0
    %p32 = scmp.lt.s32.totalorder %s31, 0
    %s33 = scalar_select %p32, %s31, 0
    %s34 = smul.u32 2, %s33
  $region9: #{mae_loss.1} parent=0 // pred_fallthru
    _
  %s35 = sadd.s32 0, 0
  %p36 = scmp.lt.s32.totalorder %s35, 0
  %s37 = scalar_select %p36, %s35, 0
  %s38 = smul.u32 2, %s37
  %p39 = scmp.lt.s32.totalorder %s38, 1
  %s40 = scalar_select %p39, %s38, 1
  %s41 = smul.addr %s40, 8
  %s42 = scalar_lea.vmem %s0, %s41
  %s43 = sadd.s32 0, 0
  %p44 = scmp.lt.s32.totalorder %s43, 0
  %s45 = scalar_select %p44, %s43, 0
  %s46 = smul.u32 2, %s45
  %p47 = scmp.lt.s32.totalorder %s46, 1
  %s48 = scalar_select %p47, %s46, 1
  %s49 = smul.addr %s48, 8
  %s50 = scalar_lea.vmem %s1, %s49
  %s51 = sadd.s32 0, 0
  %p52 = scmp.lt.s32.totalorder %s51, 0
  %s53 = scalar_select %p52, %s51, 0
  %s54 = smul.u32 2, %s53
  %p55 = scmp.lt.s32.totalorder %s54, 1
  %s56 = scalar_select %p55, %s54, 1
  %s57 = smul.addr %s56, 8
  %s58 = scalar_lea.vmem %s0, %s57
  %s59 = sadd.s32 0, 0
  %p60 = scmp.lt.s32.totalorder %s59, 0
  %s61 = scalar_select %p60, %s59, 0
  %s62 = smul.u32 2, %s61
  %s63 = sadd.s32 0, 0
  %p64 = scmp.lt.s32.totalorder %s63, 0
  %s65 = scalar_select %p64, %s63, 0
  %s66 = smul.u32 2, %s65
  %p67 = scmp.lt.s32.totalorder %s66, 1
  %s68 = scalar_select %p67, %s66, 1
  %s69 = smul.addr %s68, 8
  %s70 = scalar_lea.vmem %s1, %s69
  %s71 = sadd.s32 0, 0
  %p72 = scmp.lt.s32.totalorder %s71, 0
  %s73 = scalar_select %p72, %s71, 0
  %s74 = smul.u32 2, %s73
  %p75 = scmp.eq.s32.totalorder 0, 0
  // Predicated region
  $region10: #{mae_loss.1} parent=0 // pred_check
    %p76 = pneg %p75
  $region11: #{mae_loss.1} parent=0 // pred_check_branch
    %78 = sbr.rel (%p76) target = $region13
  $region12: #{mae_loss.1} parent=0 // pred_region
    %79 = vst [vmem:[#allocation2] sm:$0xff] 0.0
    %80 = vst [vmem:[#allocation2 + $0x8] sm:$0xff] 0.0
  $region13: #{mae_loss.1} parent=0 // pred_fallthru
    _
  %v81 = vld [vmem:[%s58] sm:$0xff]
  %v82 = vld [vmem:[%s58 + $0x8] sm:$0xff]
  %v83 = vld [vmem:[%s70] sm:$0xff]
  %v84 = vld [vmem:[%s70 + $0x8] sm:$0xff]
  %v85 = vsub.f32 %v81, %v83
  %v86 = vsub.f32 %v82, %v84
  %v87 = vand.u32 2147483647, %v85
  %v88 = vand.u32 2147483647, %v86
  %s89 = sadd.s32 0, 0
  %s90 = sadd.s32 %s89, 1
  %s91 = smul.u32 %s90, 16
  %p92 = scmp.le.s32.totalorder %s91, 16
  // Predicated region
  $region14: #{mae_loss.1} parent=0 // pred_check
    %p93 = pneg %p92
  $region15: #{mae_loss.1} parent=0 // pred_check_branch
    %95 = sbr.rel (%p93) target = $region17
  $region16: #{mae_loss.1} parent=0 // pred_region
    %v96 = vld [vmem:[#allocation2] sm:$0xff]
    %v97 = vld [vmem:[#allocation2 + $0x8] sm:$0xff]
    %v98 = vadd.f32 %v96, %v87
    %v99 = vadd.f32 %v97, %v88
    %100 = vst [vmem:[#allocation2] sm:$0xff] %v98
    %101 = vst [vmem:[#allocation2 + $0x8] sm:$0xff] %v99
  $region17: #{mae_loss.1} parent=0 // pred_fallthru
    _
  %p102 = scmp.gt.s32.totalorder %s91, 16
  // Predicated region
  $region18: #{mae_loss.1} parent=0 // pred_check
    %p103 = pneg %p102
  $region19: #{mae_loss.1} parent=0 // pred_check_branch
    %105 = sbr.rel (%p103) target = $region21
  $region20: #{mae_loss.1} parent=0 // pred_region
    %s106 = smul.u32 %s89, 16
    %v107 = vlaneseq
    %v108 = vshrl.u32 %v107, 7
    %v109 = vadd.s32 %v108, 8
    %v110 = vstv %s106
    %v111 = vadd.s32 %v110, %v108
    %v112 = vadd.s32 %v110, %v109
    %v113 = vld [vmem:[#allocation2] sm:$0xff]
    %v114 = vld [vmem:[#allocation2 + $0x8] sm:$0xff]
    %vm115 = vcmp.lt.s32.totalorder %v111, 16
    %vm116 = vcmp.lt.s32.totalorder %v112, 16
    %v117 = vsel %vm115, %v87, 0.0
    %v118 = vsel %vm116, %v88, 0.0
    %v119 = vadd.f32 %v113, %v117
    %v120 = vadd.f32 %v114, %v118
    %121 = vst [vmem:[#allocation2] sm:$0xff] %v119
    %122 = vst [vmem:[#allocation2 + $0x8] sm:$0xff] %v120
  $region21: #{mae_loss.1} parent=0 // pred_fallthru
    _
  // Predicated region
  $region22: #{mae_loss.1} parent=0 // pred_check
    %p123 = pneg %p75
  $region23: #{mae_loss.1} parent=0 // pred_check_branch
    %125 = sbr.rel (%p123) target = $region25
  $region24: #{mae_loss.1} parent=0 // pred_region
    %v126 = vld [vmem:[#allocation2] sm:$0xff]
    %v127 = vld [vmem:[#allocation2 + $0x8] sm:$0xff]
    %v128 = vadd.f32 %v126, %v127
    %v129 = vrot.slane %v128, 4
    %v130 = vadd.f32 %v128, %v129
    %v131 = vrot.slane %v130, 2
    %v132 = vadd.f32 %v130, %v131
    %v133 = vrot.slane %v132, 1
    %v134 = vadd.f32 %v132, %v133
    %v135 = vlaneseq
    %v136 = vshrl.u32 %v135, 7
    %vm137 = vcmp.eq.s32.totalorder %v136, 0
    %v138 = vsel %vm137, %v134, 0.0
    %139 = vst [vmem:[%s2] sm:$0xff] %v138
  $region25: #{mae_loss.1} parent=0 // pred_fallthru
    _
  // Predicated region
  $region26: #{mae_loss.1} parent=0 // pred_check
    _
  $region27: #{mae_loss.1} parent=0 // pred_check_branch
    %141 = sbr.rel (0) target = $region29
  $region28: #{mae_loss.1} parent=0 // pred_region
    _
  $region29: #{mae_loss.1} parent=0 // pred_fallthru
    _
  // Predicated region
  $region30: #{mae_loss.1} parent=0 // pred_check
    _
  $region31: #{mae_loss.1} parent=0 // pred_check_branch
    %143 = sbr.rel (0) target = $region33
  $region32: #{mae_loss.1} parent=0 // pred_region
    _
  $region33: #{mae_loss.1} parent=0 // pred_fallthru
    _

</llo_original>
